<compile_context>
chip_gen: v7x
topology: tpu7x:2x2x1
jax: 0.10.0
libtpu: 0.0.40
codegen_flags: <defaults>
</compile_context>

<pallas_src>
import functools

import jax
import jax.numpy as jnp
from jax import lax
from jax.experimental import pallas as pl
from jax.experimental.pallas import tpu as pltpu

BN_EPS = 1e-5


def _round_up(n, m):
    return ((n + m - 1) // m) * m


def _pad2(x, rows, cols):
    out = jnp.zeros((rows, cols), x.dtype)
    return out.at[: x.shape[0], : x.shape[1]].set(x)


def _fasttext_kernel(ids_ref, embed_ref, w1_ref, b1_ref, w2_ref, b2_ref,
                     out_ref, *, inv_s):
    TB, S = ids_ref.shape
    Vp = embed_ref.shape[0]

    # ---- Bag-of-words counts: reduce one-hot over S before hitting the MXU --
    ids = ids_ref[...]                                            # (TB, S) int32
    vocab_iota = lax.broadcasted_iota(jnp.int32, (TB, S, Vp), 2)  # (TB, S, Vp)
    onehot = (ids[:, :, None] == vocab_iota).astype(jnp.float32)  # (TB, S, Vp)
    # Note: out-of-range ids (>= V) silently contribute a zero embedding row.
    counts = jnp.sum(onehot, axis=1).astype(jnp.bfloat16)         # (TB, Vp), exact ints

    # ---- Mean embedding via a single small matmul (bf16 MXU, f32 acc) -------
    sum_emb = jnp.dot(counts, embed_ref[...],
                      preferred_element_type=jnp.float32)         # (TB, Ep)
    mean_emb = sum_emb * jnp.float32(inv_s)                       # exact 1/S scale in f32

    # ---- Linear(E -> H) with eval-mode BatchNorm pre-folded into w1/b1 ------
    h = jnp.dot(mean_emb.astype(jnp.bfloat16), w1_ref[...],
                preferred_element_type=jnp.float32) + b1_ref[...]  # (TB, Hp)

    # ---- Dropout(0.5): identity in eval mode; ReLU ---------------------------
    h = jnp.maximum(h, 0.0)

    # ---- Linear(H -> O) ------------------------------------------------------
    out_ref[...] = jnp.dot(h.astype(jnp.bfloat16), w2_ref[...],
                           preferred_element_type=jnp.float32) + b2_ref[...]


def fasttext_forward(ids, embed, w1, b1, gamma, beta, rmean, rvar, w2, b2,
                     *, bn_eps=BN_EPS, block_b=128):
    B, S = ids.shape
    V, E = embed.shape
    H = w1.shape[1]
    O = w2.shape[1]

    # ---- Fold eval-mode BatchNorm1d into Linear(E->H) (wrapper side, f32) ---
    scale = gamma * lax.rsqrt(rvar + bn_eps)                      # (H,)
    w1_f = w1 * scale[None, :]                                    # (E, H)
    b1_f = (b1 - rmean) * scale + beta                            # (H,)

    # ---- Lane / tile padding -------------------------------------------------
    Vp = _round_up(V, 128)
    Ep = _round_up(E, 128)
    Hp = _round_up(H, 128)
    Op = _round_up(O, 128)
    TB = min(block_b, _round_up(B, 8))                            # batch tile (mult. of 8)
    Bp = _round_up(B, TB)

    ids_p = jnp.zeros((Bp, S), jnp.int32).at[:B].set(ids.astype(jnp.int32))
    embed_p = _pad2(embed, Vp, Ep).astype(jnp.bfloat16)
    w1_p = _pad2(w1_f, Ep, Hp).astype(jnp.bfloat16)
    b1_p = _pad2(b1_f[None, :], 1, Hp).astype(jnp.float32)
    w2_p = _pad2(w2, Hp, Op).astype(jnp.bfloat16)
    b2_p = _pad2(b2[None, :], 1, Op).astype(jnp.float32)

    # VMEM budget: all blocks are double-buffered by the pipeline; keep at
    # least the conservative 16 MiB (v5e default) and scale up for big tables.
    block_bytes = (TB * S * 4 + Vp * Ep * 2 + Ep * Hp * 2 + Hp * 4
                   + Hp * Op * 2 + Op * 4 + TB * Op * 4)
    vmem_bytes = int(min(max(2 * block_bytes + (2 << 20), 16 << 20), 100 << 20))

    kernel = functools.partial(_fasttext_kernel, inv_s=float(1.0 / S))

    out = pl.pallas_call(
        kernel,
        out_shape=jax.ShapeDtypeStruct((Bp, Op), jnp.float32),
        grid=(Bp // TB,),
        in_specs=[
            pl.BlockSpec((TB, S), lambda i: (i, 0)),      # ids (batch-tiled)
            pl.BlockSpec((Vp, Ep), lambda i: (0, 0)),     # embedding table (bf16)
            pl.BlockSpec((Ep, Hp), lambda i: (0, 0)),     # w1 (BN folded, bf16)
            pl.BlockSpec((1, Hp), lambda i: (0, 0)),      # b1 (BN folded, f32)
            pl.BlockSpec((Hp, Op), lambda i: (0, 0)),     # w2 (bf16)
            pl.BlockSpec((1, Op), lambda i: (0, 0)),      # b2 (f32)
        ],
        out_specs=pl.BlockSpec((TB, Op), lambda i: (i, 0)),
        compiler_params=pltpu.CompilerParams(
            dimension_semantics=("parallel",),
            vmem_limit_bytes=vmem_bytes,
        ),
    )(ids_p, embed_p, w1_p, b1_p, w2_p, b2_p)

    return out[:B, :O]


def _xavier_uniform(key, shape):
    fan_in, fan_out = shape[0], shape[1]
    limit = (6.0 / (fan_in + fan_out)) ** 0.5
    return jax.random.uniform(key, shape, jnp.float32, -limit, limit)


def _reference(ids, embed, w1, b1, gamma, beta, rmean, rvar, w2, b2,
               eps=BN_EPS):
    x = embed[ids]                          # (B, S, E)
    m = jnp.mean(x, axis=1)                 # (B, E)
    h = m @ w1 + b1
    h = (h - rmean) * lax.rsqrt(rvar + eps) * gamma + beta
    h = jnp.maximum(h, 0.0)
    return h @ w2 + b2


if __name__ == "__main__":
    # Small shapes consistent with the module's forward (ids: (B, S)).
    B, S = 8, 16            # batch, sequence length
    V = 64                  # vocab size
    E = 128                 # embedding_dim
    H = 64                  # hidden_dim
    O = 14                  # out_dim

    key = jax.random.PRNGKey(0)
    keys = jax.random.split(key, 8)

    ids = jax.random.randint(keys[0], (B, S), 0, V, dtype=jnp.int32)

    embed = _xavier_uniform(keys[1], (V, E))               # nn.Embedding weight
    w1 = _xavier_uniform(keys[2], (E, H))                  # Linear(E->H) weight^T
    b1 = jnp.zeros((H,), jnp.float32)
    w2 = _xavier_uniform(keys[3], (H, O))                  # Linear(H->O) weight^T
    b2 = jnp.zeros((O,), jnp.float32)
    # Non-trivial eval-mode BatchNorm statistics (exercises the folding path).
    gamma = jax.random.uniform(keys[4], (H,), jnp.float32, 0.5, 1.5)
    beta = jax.random.normal(keys[5], (H,), jnp.float32) * 0.1
    rmean = jax.random.normal(keys[6], (H,), jnp.float32) * 0.05
    rvar = jax.random.uniform(keys[7], (H,), jnp.float32, 0.5, 1.5)

    out = fasttext_forward(ids, embed, w1, b1, gamma, beta, rmean, rvar, w2, b2)
    out = jax.block_until_ready(out)

    ref = _reference(ids, embed, w1, b1, gamma, beta, rmean, rvar, w2, b2)
    assert out.shape == (B, O)
    # bf16 MXU operands (f32 accumulation) -> slightly looser tolerance vs f32 ref.
    assert jnp.allclose(out, ref, atol=2e-2, rtol=2e-2), \
        f"mismatch vs JAX reference (max abs err {jnp.max(jnp.abs(out - ref))})"

    print("KERNEL_OK")
</pallas_src>

<mosaic_0001>
module attributes {stable_mosaic.version = 11 : i64} {
  func.func @_fasttext_kernel(%arg0: i32, %arg1: memref<8x16xi32, #tpu.memory_space<vmem>>, %arg2: memref<128x128xbf16, #tpu.memory_space<vmem>>, %arg3: memref<128x128xbf16, #tpu.memory_space<vmem>>, %arg4: memref<1x128xf32, #tpu.memory_space<vmem>>, %arg5: memref<128x128xbf16, #tpu.memory_space<vmem>>, %arg6: memref<1x128xf32, #tpu.memory_space<vmem>>, %arg7: memref<8x128xf32, #tpu.memory_space<vmem>>) attributes {dimension_semantics = [#tpu.dimension_semantics<parallel>], iteration_bounds = array<i64: 1>, scalar_prefetch = 0 : i64, scratch_operands = 0 : i64, tpu.core_type = #tpu.core_type<tc>, window_params = [{transform_indices = @transform_0, window_bounds = array<i64: 8, 16>}, {pipeline_mode = #tpu.pipeline_mode<synchronous>, transform_indices = @transform_1, window_bounds = array<i64: 128, 128>}, {pipeline_mode = #tpu.pipeline_mode<synchronous>, transform_indices = @transform_2, window_bounds = array<i64: 128, 128>}, {pipeline_mode = #tpu.pipeline_mode<synchronous>, transform_indices = @transform_3, window_bounds = array<i64: 1, 128>}, {pipeline_mode = #tpu.pipeline_mode<synchronous>, transform_indices = @transform_4, window_bounds = array<i64: 128, 128>}, {pipeline_mode = #tpu.pipeline_mode<synchronous>, transform_indices = @transform_5, window_bounds = array<i64: 1, 128>}, {transform_indices = @transform_6, window_bounds = array<i64: 8, 128>}]} {
    %c0 = arith.constant 0 : index
    %c0_0 = arith.constant 0 : index
    %0 = vector.load %arg1[%c0, %c0_0] : memref<8x16xi32, #tpu.memory_space<vmem>>, vector<8x16xi32>
    %1 = tpu.iota {dimensions = array<i32: 2>} : vector<8x16x128xi32>
    %2 = vector.shape_cast %0 : vector<8x16xi32> to vector<8x16x1xi32>
    %3 = vector.broadcast %2 : vector<8x16x1xi32> to vector<8x16x128xi32>
    %4 = arith.cmpi eq, %3, %1 : vector<8x16x128xi32>
    %5 = arith.extui %4 : vector<8x16x128xi1> to vector<8x16x128xi32>
    %6 = arith.sitofp %5 : vector<8x16x128xi32> to vector<8x16x128xf32>
    %cst = arith.constant dense<0.000000e+00> : vector<8x128xf32>
    %7 = vector.multi_reduction <add>, %6, %cst [1] : vector<8x16x128xf32> to vector<8x128xf32>
    %8 = arith.truncf %7 : vector<8x128xf32> to vector<8x128xbf16>
    %c0_1 = arith.constant 0 : index
    %c0_2 = arith.constant 0 : index
    %9 = vector.load %arg2[%c0_1, %c0_2] : memref<128x128xbf16, #tpu.memory_space<vmem>>, vector<128x128xbf16>
    %cst_3 = arith.constant dense<0.000000e+00> : vector<8x128xf32>
    %10 = tpu.matmul %8, %9, %cst_3 {dimension_numbers = #tpu.dot_dimension_numbers<[1], [0], [0], [1], [0, 0, 1, 1], [], []>} : vector<8x128xbf16>, vector<128x128xbf16>, vector<8x128xf32> -> vector<8x128xf32>
    %cst_4 = arith.constant 6.250000e-02 : f32
    %11 = vector.broadcast %cst_4 : f32 to vector<8x128xf32>
    %12 = arith.mulf %10, %11 : vector<8x128xf32>
    %13 = arith.truncf %12 : vector<8x128xf32> to vector<8x128xbf16>
    %c0_5 = arith.constant 0 : index
    %c0_6 = arith.constant 0 : index
    %14 = vector.load %arg3[%c0_5, %c0_6] : memref<128x128xbf16, #tpu.memory_space<vmem>>, vector<128x128xbf16>
    %cst_7 = arith.constant dense<0.000000e+00> : vector<8x128xf32>
    %15 = tpu.matmul %13, %14, %cst_7 {dimension_numbers = #tpu.dot_dimension_numbers<[1], [0], [0], [1], [0, 0, 1, 1], [], []>} : vector<8x128xbf16>, vector<128x128xbf16>, vector<8x128xf32> -> vector<8x128xf32>
    %c0_8 = arith.constant 0 : index
    %c0_9 = arith.constant 0 : index
    %16 = vector.load %arg4[%c0_8, %c0_9] : memref<1x128xf32, #tpu.memory_space<vmem>>, vector<1x128xf32>
    %17 = vector.broadcast %16 : vector<1x128xf32> to vector<8x128xf32>
    %18 = arith.addf %15, %17 : vector<8x128xf32>
    %cst_10 = arith.constant 0.000000e+00 : f32
    %19 = vector.broadcast %cst_10 : f32 to vector<8x128xf32>
    %20 = arith.maximumf %18, %19 : vector<8x128xf32>
    %21 = arith.truncf %20 : vector<8x128xf32> to vector<8x128xbf16>
    %c0_11 = arith.constant 0 : index
    %c0_12 = arith.constant 0 : index
    %22 = vector.load %arg5[%c0_11, %c0_12] : memref<128x128xbf16, #tpu.memory_space<vmem>>, vector<128x128xbf16>
    %cst_13 = arith.constant dense<0.000000e+00> : vector<8x128xf32>
    %23 = tpu.matmul %21, %22, %cst_13 {dimension_numbers = #tpu.dot_dimension_numbers<[1], [0], [0], [1], [0, 0, 1, 1], [], []>} : vector<8x128xbf16>, vector<128x128xbf16>, vector<8x128xf32> -> vector<8x128xf32>
    %c0_14 = arith.constant 0 : index
    %c0_15 = arith.constant 0 : index
    %24 = vector.load %arg6[%c0_14, %c0_15] : memref<1x128xf32, #tpu.memory_space<vmem>>, vector<1x128xf32>
    %25 = vector.broadcast %24 : vector<1x128xf32> to vector<8x128xf32>
    %26 = arith.addf %23, %25 : vector<8x128xf32>
    %c0_16 = arith.constant 0 : index
    %c0_17 = arith.constant 0 : index
    %27 = vector.load %arg7[%c0_16, %c0_17] : memref<8x128xf32, #tpu.memory_space<vmem>>, vector<8x128xf32>
    tpu.vector_store %arg7[%c0_16, %c0_17], %26 {strides = array<i32>} : memref<8x128xf32, #tpu.memory_space<vmem>>, vector<8x128xf32>,
    return
  }
  func.func @transform_0(%arg0: i32) -> (i32, i32) {
    %c0_i32 = arith.constant 0 : i32
    %c0_i32_0 = arith.constant 0 : i32
    return %arg0, %c0_i32 : i32, i32
  }
  func.func @transform_1(%arg0: i32) -> (i32, i32) {
    %c0_i32 = arith.constant 0 : i32
    %c0_i32_0 = arith.constant 0 : i32
    %c0_i32_1 = arith.constant 0 : i32
    return %c0_i32, %c0_i32_0 : i32, i32
  }
  func.func @transform_2(%arg0: i32) -> (i32, i32) {
    %c0_i32 = arith.constant 0 : i32
    %c0_i32_0 = arith.constant 0 : i32
    %c0_i32_1 = arith.constant 0 : i32
    return %c0_i32, %c0_i32_0 : i32, i32
  }
  func.func @transform_3(%arg0: i32) -> (i32, i32) {
    %c0_i32 = arith.constant 0 : i32
    %c0_i32_0 = arith.constant 0 : i32
    %c0_i32_1 = arith.constant 0 : i32
    return %c0_i32, %c0_i32_0 : i32, i32
  }
  func.func @transform_4(%arg0: i32) -> (i32, i32) {
    %c0_i32 = arith.constant 0 : i32
    %c0_i32_0 = arith.constant 0 : i32
    %c0_i32_1 = arith.constant 0 : i32
    return %c0_i32, %c0_i32_0 : i32, i32
  }
  func.func @transform_5(%arg0: i32) -> (i32, i32) {
    %c0_i32 = arith.constant 0 : i32
    %c0_i32_0 = arith.constant 0 : i32
    %c0_i32_1 = arith.constant 0 : i32
    return %c0_i32, %c0_i32_0 : i32, i32
  }
  func.func @transform_6(%arg0: i32) -> (i32, i32) {
    %c0_i32 = arith.constant 0 : i32
    %c0_i32_0 = arith.constant 0 : i32
    return %arg0, %c0_i32 : i32, i32
  }
}

</mosaic_0001>

<llo_original>
// kernel: tpu_custom_call.1
$region0: #{tpu_custom_call.1}
  #allocation0 [shape = 'u32[]', space=smem, size = 0x4, offset = 0x4, fixed_abs, tag = 'smem constant byte address 0x4 - core index']
  #allocation1 [shape = 'u32[144,128]{1,0:T(1,128)}', space=vmem, size = 0x12000, scoped, tag = 'internal scratch']
  %s0 = inlined_call_operand.hbm [shape: s32[8,16], index: 0, kind: input, shape index: {}]
  %s1 = inlined_call_operand.hbm [shape: bf16[128,128], index: 1, kind: input, shape index: {}]
  %s2 = inlined_call_operand.hbm [shape: bf16[128,128], index: 2, kind: input, shape index: {}]
  %s3 = inlined_call_operand.vmem [shape: f32[1,128], index: 3, kind: input, shape index: {}]
  %s4 = inlined_call_operand.hbm [shape: bf16[128,128], index: 4, kind: input, shape index: {}]
  %s5 = inlined_call_operand.vmem [shape: f32[1,128], index: 5, kind: input, shape index: {}]
  %s6 = inlined_call_operand.hbm [shape: f32[8,128], index: 6, kind: output, shape index: {}]
  %s7 = sld [smem:[#allocation0]]
  $region50: #{tpu_custom_call.1} parent=0
    _
  %s9 = ssub.s32 1, %s7
  %s10 = scalar_select 0, %s9, %s7
  $region1: #{tpu_custom_call.1} parent=0
    #allocation2 [shape = 'u8[4096]{0}', space=vmem, size = 0x1000, scoped, tag = 'input window, operand 0, single buffered']
    #allocation3 [shape = 's32[1]{0}', space=sflag, size = 0x4, scoped, tag = 'scoped memory for tpu_custom_call.1']
    #allocation4 [shape = 's32[1]{0}', space=sflag, size = 0x4, scoped, tag = 'scoped memory for tpu_custom_call.1']
    #allocation5 [shape = 'u8[32768]{0}', space=vmem, size = 0x8000, scoped, tag = 'input window, operand 1, single buffered']
    #allocation6 [shape = 's32[1]{0}', space=sflag, size = 0x4, scoped, tag = 'scoped memory for tpu_custom_call.1']
    #allocation7 [shape = 'u8[32768]{0}', space=vmem, size = 0x8000, scoped, tag = 'input window, operand 2, single buffered']
    #allocation8 [shape = 'u8[32768]{0}', space=vmem, size = 0x8000, scoped, tag = 'input window, operand 4, single buffered']
    #allocation9 [shape = 's32[1]{0}', space=sflag, size = 0x4, scoped, tag = 'scoped memory for tpu_custom_call.1']
    #allocation10 [shape = 'u8[4096]{0}', space=vmem, size = 0x1000, scoped, tag = 'output window, operand 0, single buffered']
    %11 = vsyncpa [#allocation3], 0
    %12 = vsyncpa [#allocation6], 0
    %13 = vsyncpa [#allocation9], 0
    %14 = vsyncpa [#allocation4], 0
    // Predicated region
    $region2: #{tpu_custom_call.1} parent=1 // pred_check
      _
    $region3: #{tpu_custom_call.1} parent=1 // pred_check_branch
      %16 = sbr.rel (0) target = $region5
    $region4: #{tpu_custom_call.1} parent=1 // pred_region
      %s18 = ssub.s32 128, 128
      %19 = vsyncadd [#allocation3], %s18
      %s21 = sshll.u32 [#allocation2], 4
      %s22 = int_to_ptr.vmem [resolvable:$true] %s21
      %24 = dma.hbm_to_vmem [thread:$0]  %s0, 128, %s22, [#allocation3]
    $region5: #{tpu_custom_call.1} parent=1 // pred_fallthru
      _
    // Predicated region
    $region6: #{tpu_custom_call.1} parent=1 // pred_check
      _
    $region7: #{tpu_custom_call.1} parent=1 // pred_check_branch
      %26 = sbr.rel (0) target = $region9
    $region8: #{tpu_custom_call.1} parent=1 // pred_region
      %s28 = ssub.s32 1024, 1024
      %29 = vsyncadd [#allocation6], %s28
      %s30 = sshll.u32 [#allocation5], 4
      %s31 = int_to_ptr.vmem [resolvable:$true] %s30
      %36 = dma.hbm_to_vmem [thread:$0]  %s1, 1024, %s31, [#allocation6], 64, 64, 4
    $region9: #{tpu_custom_call.1} parent=1 // pred_fallthru
      _
    // Predicated region
    $region10: #{tpu_custom_call.1} parent=1 // pred_check
      _
    $region11: #{tpu_custom_call.1} parent=1 // pred_check_branch
      %38 = sbr.rel (0) target = $region13
    $region12: #{tpu_custom_call.1} parent=1 // pred_region
      %s40 = ssub.s32 1024, 1024
      %41 = vsyncadd [#allocation6], %s40
      %s42 = sshll.u32 [#allocation7], 4
      %s43 = int_to_ptr.vmem [resolvable:$true] %s42
      %48 = dma.hbm_to_vmem [thread:$0]  %s2, 1024, %s43, [#allocation6], 64, 64, 4
    $region13: #{tpu_custom_call.1} parent=1 // pred_fallthru
      _
    // Predicated region
    $region14: #{tpu_custom_call.1} parent=1 // pred_check
      _
    $region15: #{tpu_custom_call.1} parent=1 // pred_check_branch
      %50 = sbr.rel (0) target = $region17
    $region16: #{tpu_custom_call.1} parent=1 // pred_region
      _
    $region17: #{tpu_custom_call.1} parent=1 // pred_fallthru
      _
    // Predicated region
    $region18: #{tpu_custom_call.1} parent=1 // pred_check
      _
    $region19: #{tpu_custom_call.1} parent=1 // pred_check_branch
      %52 = sbr.rel (0) target = $region21
    $region20: #{tpu_custom_call.1} parent=1 // pred_region
      %s54 = ssub.s32 1024, 1024
      %55 = vsyncadd [#allocation9], %s54
      %s56 = sshll.u32 [#allocation8], 4
      %s57 = int_to_ptr.vmem [resolvable:$true] %s56
      %62 = dma.hbm_to_vmem [thread:$0]  %s4, 1024, %s57, [#allocation9], 64, 64, 4
    $region21: #{tpu_custom_call.1} parent=1 // pred_fallthru
      _
    // Predicated region
    $region22: #{tpu_custom_call.1} parent=1 // pred_check
      _
    $region23: #{tpu_custom_call.1} parent=1 // pred_check_branch
      %64 = sbr.rel (0) target = $region25
    $region24: #{tpu_custom_call.1} parent=1 // pred_region
      _
    $region25: #{tpu_custom_call.1} parent=1 // pred_fallthru
      _
    // Predicated region
    $region26: #{tpu_custom_call.1} parent=1 // pred_check
      _
    $region27: #{tpu_custom_call.1} parent=1 // pred_check_branch
      %66 = sbr.rel (0) target = $region29
    $region28: #{tpu_custom_call.1} parent=1 // pred_region
      %67 = dma.done [#allocation3], 128
    $region29: #{tpu_custom_call.1} parent=1 // pred_fallthru
      _
    // Predicated region
    $region30: #{tpu_custom_call.1} parent=1 // pred_check
      _
    $region31: #{tpu_custom_call.1} parent=1 // pred_check_branch
      %69 = sbr.rel (0) target = $region33
    $region32: #{tpu_custom_call.1} parent=1 // pred_region
      %70 = dma.done [#allocation6], 1024
    $region33: #{tpu_custom_call.1} parent=1 // pred_fallthru
      _
    // Predicated region
    $region34: #{tpu_custom_call.1} parent=1 // pred_check
      _
    $region35: #{tpu_custom_call.1} parent=1 // pred_check_branch
      %72 = sbr.rel (0) target = $region37
    $region36: #{tpu_custom_call.1} parent=1 // pred_region
      %73 = dma.done [#allocation6], 1024
    $region37: #{tpu_custom_call.1} parent=1 // pred_fallthru
      _
    // Predicated region
    $region38: #{tpu_custom_call.1} parent=1 // pred_check
      _
    $region39: #{tpu_custom_call.1} parent=1 // pred_check_branch
      %75 = sbr.rel (0) target = $region41
    $region40: #{tpu_custom_call.1} parent=1 // pred_region
      %76 = dma.done [#allocation9], 1024
    $region41: #{tpu_custom_call.1} parent=1 // pred_fallthru
      _
    %v78 = vld [vmem:[#allocation2] sm:$0xff]
    %v79 = vlaneseq
    %v80 = vand.u32 %v79, 127
    %v81 = vlaneseq
    %v82 = vshrl.u32 %v81, 7
    %v83 = vsub.s32 0, %v82
    %v84 = vrot.slane %v78, %v83
    %86 = vbcast.lane.b32.xlu0 %v84, 256
    %v87 = vpop.permute.xlu0 %86
    %s89 = sor.u32 256, 8
    %90 = vbcast.lane.b32.xlu0 %v84, %s89
    %v91 = vpop.permute.xlu0 %90
    %v92 = vlaneseq
    %v93 = vshrl.u32 %v92, 7
    %v94 = vsub.s32 1, %v93
    %v95 = vrot.slane %v78, %v94
    %97 = vbcast.lane.b32.xlu0 %v95, 256
    %v98 = vpop.permute.xlu0 %97
    %s100 = sor.u32 256, 8
    %101 = vbcast.lane.b32.xlu0 %v95, %s100
    %v102 = vpop.permute.xlu0 %101
    %v103 = vlaneseq
    %v104 = vshrl.u32 %v103, 7
    %v105 = vsub.s32 2, %v104
    %v106 = vrot.slane %v78, %v105
    %108 = vbcast.lane.b32.xlu0 %v106, 256
    %v109 = vpop.permute.xlu0 %108
    %s111 = sor.u32 256, 8
    %112 = vbcast.lane.b32.xlu0 %v106, %s111
    %v113 = vpop.permute.xlu0 %112
    %v114 = vlaneseq
    %v115 = vshrl.u32 %v114, 7
    %v116 = vsub.s32 3, %v115
    %v117 = vrot.slane %v78, %v116
    %119 = vbcast.lane.b32.xlu0 %v117, 256
    %v120 = vpop.permute.xlu0 %119
    %s122 = sor.u32 256, 8
    %123 = vbcast.lane.b32.xlu0 %v117, %s122
    %v124 = vpop.permute.xlu0 %123
    %v125 = vlaneseq
    %v126 = vshrl.u32 %v125, 7
    %v127 = vsub.s32 4, %v126
    %v128 = vrot.slane %v78, %v127
    %130 = vbcast.lane.b32.xlu0 %v128, 256
    %v131 = vpop.permute.xlu0 %130
    %s133 = sor.u32 256, 8
    %134 = vbcast.lane.b32.xlu0 %v128, %s133
    %v135 = vpop.permute.xlu0 %134
    %v136 = vlaneseq
    %v137 = vshrl.u32 %v136, 7
    %v138 = vsub.s32 5, %v137
    %v139 = vrot.slane %v78, %v138
    %141 = vbcast.lane.b32.xlu0 %v139, 256
    %v142 = vpop.permute.xlu0 %141
    %s144 = sor.u32 256, 8
    %145 = vbcast.lane.b32.xlu0 %v139, %s144
    %v146 = vpop.permute.xlu0 %145
    %v147 = vlaneseq
    %v148 = vshrl.u32 %v147, 7
    %v149 = vsub.s32 6, %v148
    %v150 = vrot.slane %v78, %v149
    %152 = vbcast.lane.b32.xlu0 %v150, 256
    %v153 = vpop.permute.xlu0 %152
    %s155 = sor.u32 256, 8
    %156 = vbcast.lane.b32.xlu0 %v150, %s155
    %v157 = vpop.permute.xlu0 %156
    %v158 = vlaneseq
    %v159 = vshrl.u32 %v158, 7
    %v160 = vsub.s32 7, %v159
    %v161 = vrot.slane %v78, %v160
    %163 = vbcast.lane.b32.xlu0 %v161, 256
    %v164 = vpop.permute.xlu0 %163
    %s166 = sor.u32 256, 8
    %167 = vbcast.lane.b32.xlu0 %v161, %s166
    %v168 = vpop.permute.xlu0 %167
    %vm169 = vcmp.eq.s32.totalorder %v87, %v80
    %vm170 = vcmp.eq.s32.totalorder %v91, %v80
    %vm171 = vcmp.eq.s32.totalorder %v98, %v80
    %vm172 = vcmp.eq.s32.totalorder %v102, %v80
    %vm173 = vcmp.eq.s32.totalorder %v109, %v80
    %vm174 = vcmp.eq.s32.totalorder %v113, %v80
    %vm175 = vcmp.eq.s32.totalorder %v120, %v80
    %vm176 = vcmp.eq.s32.totalorder %v124, %v80
    %vm177 = vcmp.eq.s32.totalorder %v131, %v80
    %vm178 = vcmp.eq.s32.totalorder %v135, %v80
    %vm179 = vcmp.eq.s32.totalorder %v142, %v80
    %vm180 = vcmp.eq.s32.totalorder %v146, %v80
    %vm181 = vcmp.eq.s32.totalorder %v153, %v80
    %vm182 = vcmp.eq.s32.totalorder %v157, %v80
    %vm183 = vcmp.eq.s32.totalorder %v164, %v80
    %vm184 = vcmp.eq.s32.totalorder %v168, %v80
    %v185 = vsel %vm169, 1, 0
    %v186 = vsel %vm170, 1, 0
    %v187 = vsel %vm171, 1, 0
    %v188 = vsel %vm172, 1, 0
    %v189 = vsel %vm173, 1, 0
    %v190 = vsel %vm174, 1, 0
    %v191 = vsel %vm175, 1, 0
    %v192 = vsel %vm176, 1, 0
    %v193 = vsel %vm177, 1, 0
    %v194 = vsel %vm178, 1, 0
    %v195 = vsel %vm179, 1, 0
    %v196 = vsel %vm180, 1, 0
    %v197 = vsel %vm181, 1, 0
    %v198 = vsel %vm182, 1, 0
    %v199 = vsel %vm183, 1, 0
    %v200 = vsel %vm184, 1, 0
    %v201 = vcvt.s32.f32 %v185
    %v202 = vcvt.s32.f32 %v186
    %v203 = vcvt.s32.f32 %v187
    %v204 = vcvt.s32.f32 %v188
    %v205 = vcvt.s32.f32 %v189
    %v206 = vcvt.s32.f32 %v190
    %v207 = vcvt.s32.f32 %v191
    %v208 = vcvt.s32.f32 %v192
    %v209 = vcvt.s32.f32 %v193
    %v210 = vcvt.s32.f32 %v194
    %v211 = vcvt.s32.f32 %v195
    %v212 = vcvt.s32.f32 %v196
    %v213 = vcvt.s32.f32 %v197
    %v214 = vcvt.s32.f32 %v198
    %v215 = vcvt.s32.f32 %v199
    %v216 = vcvt.s32.f32 %v200
    %v217 = vadd.f32 %v201, %v202
    %v218 = vrot.slane %v217, 4
    %v219 = vadd.f32 %v217, %v218
    %v220 = vrot.slane %v219, 2
    %v221 = vadd.f32 %v219, %v220
    %v222 = vrot.slane %v221, 1
    %v223 = vadd.f32 %v221, %v222
    %v224 = vadd.f32 %v203, %v204
    %v225 = vrot.slane %v224, 4
    %v226 = vadd.f32 %v224, %v225
    %v227 = vrot.slane %v226, 2
    %v228 = vadd.f32 %v226, %v227
    %v229 = vrot.slane %v228, 1
    %v230 = vadd.f32 %v228, %v229
    %v231 = vadd.f32 %v205, %v206
    %v232 = vrot.slane %v231, 4
    %v233 = vadd.f32 %v231, %v232
    %v234 = vrot.slane %v233, 2
    %v235 = vadd.f32 %v233, %v234
    %v236 = vrot.slane %v235, 1
    %v237 = vadd.f32 %v235, %v236
    %v238 = vadd.f32 %v207, %v208
    %v239 = vrot.slane %v238, 4
    %v240 = vadd.f32 %v238, %v239
    %v241 = vrot.slane %v240, 2
    %v242 = vadd.f32 %v240, %v241
    %v243 = vrot.slane %v242, 1
    %v244 = vadd.f32 %v242, %v243
    %v245 = vadd.f32 %v209, %v210
    %v246 = vrot.slane %v245, 4
    %v247 = vadd.f32 %v245, %v246
    %v248 = vrot.slane %v247, 2
    %v249 = vadd.f32 %v247, %v248
    %v250 = vrot.slane %v249, 1
    %v251 = vadd.f32 %v249, %v250
    %v252 = vadd.f32 %v211, %v212
    %v253 = vrot.slane %v252, 4
    %v254 = vadd.f32 %v252, %v253
    %v255 = vrot.slane %v254, 2
    %v256 = vadd.f32 %v254, %v255
    %v257 = vrot.slane %v256, 1
    %v258 = vadd.f32 %v256, %v257
    %v259 = vadd.f32 %v213, %v214
    %v260 = vrot.slane %v259, 4
    %v261 = vadd.f32 %v259, %v260
    %v262 = vrot.slane %v261, 2
    %v263 = vadd.f32 %v261, %v262
    %v264 = vrot.slane %v263, 1
    %v265 = vadd.f32 %v263, %v264
    %v266 = vadd.f32 %v215, %v216
    %v267 = vrot.slane %v266, 4
    %v268 = vadd.f32 %v266, %v267
    %v269 = vrot.slane %v268, 2
    %v270 = vadd.f32 %v268, %v269
    %v271 = vrot.slane %v270, 1
    %v272 = vadd.f32 %v270, %v271
    %v273 = vpack.c.bf16 %v223, %v223
    %v274 = vpack.c.bf16 %v230, %v230
    %v275 = vpack.c.bf16 %v237, %v237
    %v276 = vpack.c.bf16 %v244, %v244
    %v277 = vpack.c.bf16 %v251, %v251
    %v278 = vpack.c.bf16 %v258, %v258
    %v279 = vpack.c.bf16 %v265, %v265
    %v280 = vpack.c.bf16 %v272, %v272
    %v281 = vld [vmem:[#allocation5] sm:$0xf]
    %v282 = vld [vmem:[#allocation5 + $0x4] sm:$0xf]
    %v283 = vld [vmem:[#allocation5 + $0x8] sm:$0xf]
    %v284 = vld [vmem:[#allocation5 + $0xc] sm:$0xf]
    %v285 = vld [vmem:[#allocation5 + $0x10] sm:$0xf]
    %v286 = vld [vmem:[#allocation5 + $0x14] sm:$0xf]
    %v287 = vld [vmem:[#allocation5 + $0x18] sm:$0xf]
    %v288 = vld [vmem:[#allocation5 + $0x1c] sm:$0xf]
    %v289 = vld [vmem:[#allocation5 + $0x20] sm:$0xf]
    %v290 = vld [vmem:[#allocation5 + $0x24] sm:$0xf]
    %v291 = vld [vmem:[#allocation5 + $0x28] sm:$0xf]
    %v292 = vld [vmem:[#allocation5 + $0x2c] sm:$0xf]
    %v293 = vld [vmem:[#allocation5 + $0x30] sm:$0xf]
    %v294 = vld [vmem:[#allocation5 + $0x34] sm:$0xf]
    %v295 = vld [vmem:[#allocation5 + $0x38] sm:$0xf]
    %v296 = vld [vmem:[#allocation5 + $0x3c] sm:$0xf]
    %v305 = vunpack.c.l.b16 %v273
    %v306 = vunpack.c.l.b16 %v274
    %v307 = vunpack.c.l.b16 %v275
    %v308 = vunpack.c.l.b16 %v276
    %v309 = vunpack.c.l.b16 %v277
    %v310 = vunpack.c.l.b16 %v278
    %v311 = vunpack.c.l.b16 %v279
    %v312 = vunpack.c.l.b16 %v280
    %vm313 = vcmask 1041409
    %v314 = vsel %vm313, %v306, %v305
    %vm315 = vcmask 1042434
    %v316 = vsel %vm315, %v307, %v314
    %vm317 = vcmask 1043459
    %v318 = vsel %vm317, %v308, %v316
    %vm319 = vcmask 1044484
    %v320 = vsel %vm319, %v309, %v318
    %vm321 = vcmask 1045509
    %v322 = vsel %vm321, %v310, %v320
    %vm323 = vcmask 1046534
    %v324 = vsel %vm323, %v311, %v322
    %vm325 = vcmask 1047559
    %v326 = vsel %vm325, %v312, %v324
    %v327 = vpack.c.b16 %v326, %v326
    %v345 = vunpack.c.l.b16 %v281
    %v346 = vunpack.c.l.b16 %v282
    %v347 = vunpack.c.l.b16 %v283
    %v348 = vunpack.c.l.b16 %v284
    %v349 = vunpack.c.l.b16 %v285
    %v350 = vunpack.c.l.b16 %v286
    %v351 = vunpack.c.l.b16 %v287
    %v352 = vunpack.c.l.b16 %v288
    %v353 = vunpack.c.l.b16 %v289
    %v354 = vunpack.c.l.b16 %v290
    %v355 = vunpack.c.l.b16 %v291
    %v356 = vunpack.c.l.b16 %v292
    %v357 = vunpack.c.l.b16 %v293
    %v358 = vunpack.c.l.b16 %v294
    %v359 = vunpack.c.l.b16 %v295
    %v360 = vunpack.c.l.b16 %v296
    %v361 = vpack.c.b16 %v346, %v345
    %v362 = vpack.c.b16 %v348, %v347
    %v363 = vpack.c.b16 %v350, %v349
    %v364 = vpack.c.b16 %v352, %v351
    %v365 = vpack.c.b16 %v354, %v353
    %v366 = vpack.c.b16 %v356, %v355
    %v367 = vpack.c.b16 %v358, %v357
    %v368 = vpack.c.b16 %v360, %v359
    %377 = vmatprep.subr.bf16.mxu0 0
    %378 = vmatpush1.bf16.msra.mxu0 %v361
    %379 = vmatprep.subr.bf16.mxu0 0
    %380 = vmatpush1.bf16.msra.mxu0 %v362
    %381 = vmatprep.subr.bf16.mxu0 0
    %382 = vmatpush1.bf16.msra.mxu0 %v363
    %383 = vmatprep.subr.bf16.mxu0 0
    %384 = vmatpush1.bf16.msra.mxu0 %v364
    %385 = vmatprep.subr.bf16.mxu0 0
    %386 = vmatpush1.bf16.msra.mxu0 %v365
    %387 = vmatprep.subr.bf16.mxu0 0
    %388 = vmatpush1.bf16.msra.mxu0 %v366
    %389 = vmatprep.subr.bf16.mxu0 0
    %390 = vmatpush1.bf16.msra.mxu0 %v367
    %391 = vmatprep.subr.bf16.mxu0 0
    %392 = vmatpush1.bf16.msra.mxu0 %v368
    %393 = vmatprep.subr.bf16.mxu0 0
    %394 = vmatpush1.bf16.msra.mxu0 0
    %395 = vmatprep.subr.bf16.mxu0 0
    %396 = vmatpush1.bf16.msra.mxu0 0
    %397 = vmatprep.subr.bf16.mxu0 0
    %398 = vmatpush1.bf16.msra.mxu0 0
    %399 = vmatprep.subr.bf16.mxu0 0
    %400 = vmatpush1.bf16.msra.mxu0 0
    %401 = vmatprep.subr.bf16.mxu0 0
    %402 = vmatpush1.bf16.msra.mxu0 0
    %403 = vmatprep.subr.bf16.mxu0 0
    %404 = vmatpush1.bf16.msra.mxu0 0
    %405 = vmatprep.subr.bf16.mxu0 0
    %406 = vmatpush1.bf16.msra.mxu0 0
    %407 = vmatprep.subr.bf16.mxu0 0
    %408 = vmatpush1.bf16.msra.mxu0 0
    %409 = vmatprep.mubr.bf16.mxu0 0
    %410 = vmatmul.mubr.bf16.gmra.mrb[0].mxu0 %v327
    %v411 = vpop.f32.mrb[0].mxu0
    %v412 = vadd.f32 0.0, %v411
    %v413 = vpop.f32.mrb[0].mxu0
    %v414 = vpop.f32.mrb[0].mxu0
    %v415 = vpop.f32.mrb[0].mxu0
    %416 = vdwg.mxu0
    %v417 = vmul.f32 %v412, 0.0625
    %v418 = vpack.c.bf16 %v417, %v417
    %v419 = vld [vmem:[#allocation7] sm:$0xf]
    %v420 = vld [vmem:[#allocation7 + $0x4] sm:$0xf]
    %v421 = vld [vmem:[#allocation7 + $0x8] sm:$0xf]
    %v422 = vld [vmem:[#allocation7 + $0xc] sm:$0xf]
    %v423 = vld [vmem:[#allocation7 + $0x10] sm:$0xf]
    %v424 = vld [vmem:[#allocation7 + $0x14] sm:$0xf]
    %v425 = vld [vmem:[#allocation7 + $0x18] sm:$0xf]
    %v426 = vld [vmem:[#allocation7 + $0x1c] sm:$0xf]
    %v427 = vld [vmem:[#allocation7 + $0x20] sm:$0xf]
    %v428 = vld [vmem:[#allocation7 + $0x24] sm:$0xf]
    %v429 = vld [vmem:[#allocation7 + $0x28] sm:$0xf]
    %v430 = vld [vmem:[#allocation7 + $0x2c] sm:$0xf]
    %v431 = vld [vmem:[#allocation7 + $0x30] sm:$0xf]
    %v432 = vld [vmem:[#allocation7 + $0x34] sm:$0xf]
    %v433 = vld [vmem:[#allocation7 + $0x38] sm:$0xf]
    %v434 = vld [vmem:[#allocation7 + $0x3c] sm:$0xf]
    %v435 = vld [vmem:[%s3] sm:$0x1]
    %v437 = vlaneseq
    %v438 = vshrl.u32 %v437, 7
    %v439 = vsub.s32 0, %v438
    %v440 = vrot.slane %v435, %v439
    %v458 = vunpack.c.l.b16 %v419
    %v459 = vunpack.c.l.b16 %v420
    %v460 = vunpack.c.l.b16 %v421
    %v461 = vunpack.c.l.b16 %v422
    %v462 = vunpack.c.l.b16 %v423
    %v463 = vunpack.c.l.b16 %v424
    %v464 = vunpack.c.l.b16 %v425
    %v465 = vunpack.c.l.b16 %v426
    %v466 = vunpack.c.l.b16 %v427
    %v467 = vunpack.c.l.b16 %v428
    %v468 = vunpack.c.l.b16 %v429
    %v469 = vunpack.c.l.b16 %v430
    %v470 = vunpack.c.l.b16 %v431
    %v471 = vunpack.c.l.b16 %v432
    %v472 = vunpack.c.l.b16 %v433
    %v473 = vunpack.c.l.b16 %v434
    %v474 = vpack.c.b16 %v459, %v458
    %v475 = vpack.c.b16 %v461, %v460
    %v476 = vpack.c.b16 %v463, %v462
    %v477 = vpack.c.b16 %v465, %v464
    %v478 = vpack.c.b16 %v467, %v466
    %v479 = vpack.c.b16 %v469, %v468
    %v480 = vpack.c.b16 %v471, %v470
    %v481 = vpack.c.b16 %v473, %v472
    %490 = vmatprep.subr.bf16.mxu0 0
    %491 = vmatpush1.bf16.msra.mxu0 %v474
    %492 = vmatprep.subr.bf16.mxu0 0
    %493 = vmatpush1.bf16.msra.mxu0 %v475
    %494 = vmatprep.subr.bf16.mxu0 0
    %495 = vmatpush1.bf16.msra.mxu0 %v476
    %496 = vmatprep.subr.bf16.mxu0 0
    %497 = vmatpush1.bf16.msra.mxu0 %v477
    %498 = vmatprep.subr.bf16.mxu0 0
    %499 = vmatpush1.bf16.msra.mxu0 %v478
    %500 = vmatprep.subr.bf16.mxu0 0
    %501 = vmatpush1.bf16.msra.mxu0 %v479
    %502 = vmatprep.subr.bf16.mxu0 0
    %503 = vmatpush1.bf16.msra.mxu0 %v480
    %504 = vmatprep.subr.bf16.mxu0 0
    %505 = vmatpush1.bf16.msra.mxu0 %v481
    %506 = vmatprep.subr.bf16.mxu0 0
    %507 = vmatpush1.bf16.msra.mxu0 0
    %508 = vmatprep.subr.bf16.mxu0 0
    %509 = vmatpush1.bf16.msra.mxu0 0
    %510 = vmatprep.subr.bf16.mxu0 0
    %511 = vmatpush1.bf16.msra.mxu0 0
    %512 = vmatprep.subr.bf16.mxu0 0
    %513 = vmatpush1.bf16.msra.mxu0 0
    %514 = vmatprep.subr.bf16.mxu0 0
    %515 = vmatpush1.bf16.msra.mxu0 0
    %516 = vmatprep.subr.bf16.mxu0 0
    %517 = vmatpush1.bf16.msra.mxu0 0
    %518 = vmatprep.subr.bf16.mxu0 0
    %519 = vmatpush1.bf16.msra.mxu0 0
    %520 = vmatprep.subr.bf16.mxu0 0
    %521 = vmatpush1.bf16.msra.mxu0 0
    %522 = vmatprep.mubr.bf16.mxu0 0
    %523 = vmatmul.mubr.bf16.gmra.mrb[0].mxu0 %v418
    %v524 = vpop.f32.mrb[0].mxu0
    %v525 = vadd.f32 %v440, %v524
    %v526 = vpop.f32.mrb[0].mxu0
    %v527 = vpop.f32.mrb[0].mxu0
    %v528 = vpop.f32.mrb[0].mxu0
    %529 = vdwg.mxu0
    %v530 = vmax.f32 %v525, 0.0
    %v531 = vpack.c.bf16 %v530, %v530
    %v532 = vld [vmem:[#allocation8] sm:$0xf]
    %v533 = vld [vmem:[#allocation8 + $0x4] sm:$0xf]
    %v534 = vld [vmem:[#allocation8 + $0x8] sm:$0xf]
    %v535 = vld [vmem:[#allocation8 + $0xc] sm:$0xf]
    %v536 = vld [vmem:[#allocation8 + $0x10] sm:$0xf]
    %v537 = vld [vmem:[#allocation8 + $0x14] sm:$0xf]
    %v538 = vld [vmem:[#allocation8 + $0x18] sm:$0xf]
    %v539 = vld [vmem:[#allocation8 + $0x1c] sm:$0xf]
    %v540 = vld [vmem:[#allocation8 + $0x20] sm:$0xf]
    %v541 = vld [vmem:[#allocation8 + $0x24] sm:$0xf]
    %v542 = vld [vmem:[#allocation8 + $0x28] sm:$0xf]
    %v543 = vld [vmem:[#allocation8 + $0x2c] sm:$0xf]
    %v544 = vld [vmem:[#allocation8 + $0x30] sm:$0xf]
    %v545 = vld [vmem:[#allocation8 + $0x34] sm:$0xf]
    %v546 = vld [vmem:[#allocation8 + $0x38] sm:$0xf]
    %v547 = vld [vmem:[#allocation8 + $0x3c] sm:$0xf]
    %v548 = vld [vmem:[%s5] sm:$0x1]
    %v550 = vlaneseq
    %v551 = vshrl.u32 %v550, 7
    %v552 = vsub.s32 0, %v551
    %v553 = vrot.slane %v548, %v552
    %v571 = vunpack.c.l.b16 %v532
    %v572 = vunpack.c.l.b16 %v533
    %v573 = vunpack.c.l.b16 %v534
    %v574 = vunpack.c.l.b16 %v535
    %v575 = vunpack.c.l.b16 %v536
    %v576 = vunpack.c.l.b16 %v537
    %v577 = vunpack.c.l.b16 %v538
    %v578 = vunpack.c.l.b16 %v539
    %v579 = vunpack.c.l.b16 %v540
    %v580 = vunpack.c.l.b16 %v541
    %v581 = vunpack.c.l.b16 %v542
    %v582 = vunpack.c.l.b16 %v543
    %v583 = vunpack.c.l.b16 %v544
    %v584 = vunpack.c.l.b16 %v545
    %v585 = vunpack.c.l.b16 %v546
    %v586 = vunpack.c.l.b16 %v547
    %v587 = vpack.c.b16 %v572, %v571
    %v588 = vpack.c.b16 %v574, %v573
    %v589 = vpack.c.b16 %v576, %v575
    %v590 = vpack.c.b16 %v578, %v577
    %v591 = vpack.c.b16 %v580, %v579
    %v592 = vpack.c.b16 %v582, %v581
    %v593 = vpack.c.b16 %v584, %v583
    %v594 = vpack.c.b16 %v586, %v585
    %603 = vmatprep.subr.bf16.mxu0 0
    %604 = vmatpush1.bf16.msra.mxu0 %v587
    %605 = vmatprep.subr.bf16.mxu0 0
    %606 = vmatpush1.bf16.msra.mxu0 %v588
    %607 = vmatprep.subr.bf16.mxu0 0
    %608 = vmatpush1.bf16.msra.mxu0 %v589
    %609 = vmatprep.subr.bf16.mxu0 0
    %610 = vmatpush1.bf16.msra.mxu0 %v590
    %611 = vmatprep.subr.bf16.mxu0 0
    %612 = vmatpush1.bf16.msra.mxu0 %v591
    %613 = vmatprep.subr.bf16.mxu0 0
    %614 = vmatpush1.bf16.msra.mxu0 %v592
    %615 = vmatprep.subr.bf16.mxu0 0
    %616 = vmatpush1.bf16.msra.mxu0 %v593
    %617 = vmatprep.subr.bf16.mxu0 0
    %618 = vmatpush1.bf16.msra.mxu0 %v594
    %619 = vmatprep.subr.bf16.mxu0 0
    %620 = vmatpush1.bf16.msra.mxu0 0
    %621 = vmatprep.subr.bf16.mxu0 0
    %622 = vmatpush1.bf16.msra.mxu0 0
    %623 = vmatprep.subr.bf16.mxu0 0
    %624 = vmatpush1.bf16.msra.mxu0 0
    %625 = vmatprep.subr.bf16.mxu0 0
    %626 = vmatpush1.bf16.msra.mxu0 0
    %627 = vmatprep.subr.bf16.mxu0 0
    %628 = vmatpush1.bf16.msra.mxu0 0
    %629 = vmatprep.subr.bf16.mxu0 0
    %630 = vmatpush1.bf16.msra.mxu0 0
    %631 = vmatprep.subr.bf16.mxu0 0
    %632 = vmatpush1.bf16.msra.mxu0 0
    %633 = vmatprep.subr.bf16.mxu0 0
    %634 = vmatpush1.bf16.msra.mxu0 0
    %635 = vmatprep.mubr.bf16.mxu0 0
    %636 = vmatmul.mubr.bf16.gmra.mrb[0].mxu0 %v531
    %v637 = vpop.f32.mrb[0].mxu0
    %v638 = vadd.f32 %v553, %v637
    %v639 = vpop.f32.mrb[0].mxu0
    %v640 = vpop.f32.mrb[0].mxu0
    %v641 = vpop.f32.mrb[0].mxu0
    %642 = vdwg.mxu0
    %643 = vst [vmem:[#allocation10] sm:$0xff] %v638
    // Predicated region
    $region42: #{tpu_custom_call.1} parent=1 // pred_check
      _
    $region43: #{tpu_custom_call.1} parent=1 // pred_check_branch
      %645 = sbr.rel (0) target = $region45
    $region44: #{tpu_custom_call.1} parent=1 // pred_region
      %s647 = ssub.s32 128, 128
      %648 = vsyncadd [#allocation4], %s647
      %s650 = sshll.u32 [#allocation10], 4
      %s651 = int_to_ptr.vmem [resolvable:$true] %s650
      %653 = dma.vmem_to_hbm [thread:$0]  %s651, 128, %s6, [#allocation4]
    $region45: #{tpu_custom_call.1} parent=1 // pred_fallthru
      _
    // Predicated region
    $region46: #{tpu_custom_call.1} parent=1 // pred_check
      _
    $region47: #{tpu_custom_call.1} parent=1 // pred_check_branch
      %655 = sbr.rel (0) target = $region49
    $region48: #{tpu_custom_call.1} parent=1 // pred_region
      %656 = dma.done [#allocation4], 128
    $region49: #{tpu_custom_call.1} parent=1 // pred_fallthru
      _
    %657 = vsyncpa [#allocation3], 1
    %658 = vsyncpa [#allocation6], 1
    %659 = vsyncpa [#allocation9], 1
    %660 = vsyncpa [#allocation4], 1

</llo_original>
